<compile_context>
chip_gen: v6e
topology: v6e:2x2x1
jax: 0.10.0
libtpu: 0.0.40
codegen_flags: <defaults>
</compile_context>

<pallas_src>
import jax
import jax.numpy as jnp
from jax import lax
from jax.experimental import pallas as pl
from jax.experimental.pallas import tpu as pltpu

DIM = 32          # hidden dim
NLAYERS = 2       # number of MultiwayNetwork(Linear) layers
BATCH = 2
SEQ = 8
LN_EPS = 1e-5
PACK = 128 // DIM          # 4 dim-32 tokens per 128-lane packed row
LANES = PACK * DIM         # 128
TM_CAP = 8192              # token rows per grid step; packed tile = 1 MiB f32


def ffn_kernel(x_ref, mats_ref, vecs_ref, o_ref):
    # x_ref: (TP, 128) packed -- each row holds PACK consecutive dim-32 tokens.
    x = x_ref[...].astype(jnp.float32)   # no-op for f32; enables bf16 I/O
    w = mats_ref[0]                      # (128,128) block-diag folded W_eff
    avg = mats_ref[1]                    # (128,128) block-diag (1/dim)*ones
    b = vecs_ref[0:1, :]                 # (1,128) packed folded bias
    gamma = vecs_ref[1:2, :]             # (1,128) packed LN weight
    beta = vecs_ref[2:3, :]              # (1,128) packed LN bias

    # Folded linear chain: one MXU matmul, f32 accumulation.
    h = jnp.dot(x, w, preferred_element_type=jnp.float32) + b

    # LayerNorm per 32-lane token segment.  Segmented means go through the
    # (otherwise idle) MXU via the block-diagonal averaging matrix, so there
    # are no cross-lane XLU reductions and no relayout anywhere.
    mean = jnp.dot(h, avg, preferred_element_type=jnp.float32)
    centered = h - mean
    var = jnp.dot(centered * centered, avg, preferred_element_type=jnp.float32)
    y = centered * lax.rsqrt(var + LN_EPS) * gamma + beta

    o_ref[...] = y.astype(o_ref.dtype)


def prepare_params(fc1_w, fc1_b, layer_ws, layer_bs, ln_gamma, ln_beta):
    """One-time fold of fc1 + all Multiway branch-A linears.

    Assumes split_position == -1 (only branch A runs), which is the module's
    configuration in its forward pass.  Weights are PyTorch (out, in) layout.

    Returns (mats, vecs) already in the 128-lane packed layout:
      mats[0] = block_diag(W_eff x PACK)       (128,128)
      mats[1] = block_diag(ones/DIM x PACK)    (128,128)  segmented-mean matmul
      vecs    = [b_eff | gamma | beta] tiled PACK times   (3,128)
    """
    dim = fc1_w.shape[0]
    w_eff = jnp.transpose(fc1_w).astype(jnp.float32)      # (in, out)
    b_eff = fc1_b.astype(jnp.float32)
    for i in range(layer_ws.shape[0]):
        lw_t = jnp.transpose(layer_ws[i]).astype(jnp.float32)
        w_eff = w_eff @ lw_t
        b_eff = b_eff @ lw_t + layer_bs[i].astype(jnp.float32)

    eye = jnp.eye(PACK, dtype=jnp.float32)
    w_blk = jnp.kron(eye, w_eff)                                        # (128,128)
    avg_blk = jnp.kron(eye, jnp.full((dim, dim), 1.0 / dim, jnp.float32))
    mats = jnp.stack([w_blk, avg_blk], axis=0)                          # (2,128,128)

    vecs = jnp.stack([
        jnp.tile(b_eff, PACK),
        jnp.tile(ln_gamma.astype(jnp.float32), PACK),
        jnp.tile(ln_beta.astype(jnp.float32), PACK),
    ], axis=0)                                                          # (3,128)
    return mats, vecs


def _round_up(x, m):
    return (x + m - 1) // m * m


def _choose_tiling(m):
    """Return (padded_token_rows, tile_token_rows)."""
    if m <= 2048:
        # Single step: block == full packed array, only need exact packing.
        m_pad = _round_up(m, PACK)
        return m_pad, m_pad
    if m <= 2 * TM_CAP:
        # 2-step "parallel" grid keeps both v7x TensorCores busy at mid sizes.
        m_pad = _round_up(m, 2 * 8 * PACK)   # packed tile rows multiple of 8
        return m_pad, m_pad // 2
    # Large M: cap the tile, pad up to a multiple (tail rows are discarded).
    m_pad = _round_up(m, TM_CAP)
    return m_pad, TM_CAP


def ffn_forward(x, mats, vecs):
    """x: [..., DIM] (f32 or bf16); params from prepare_params()."""
    orig_shape = x.shape
    dim = orig_shape[-1]
    assert dim == DIM and mats.shape == (2, LANES, LANES)
    m = 1
    for s in orig_shape[:-1]:
        m *= s
    x2d = x.reshape(m, dim)

    m_pad, tile = _choose_tiling(m)
    if m_pad != m:
        x2d = jnp.pad(x2d, ((0, m_pad - m), (0, 0)))

    # Byte-identical lane-dense repack: PACK consecutive tokens per 128-lane row.
    xp = x2d.reshape(m_pad // PACK, LANES)
    tp = tile // PACK                        # packed rows per grid step
    steps = m_pad // tile

    out = pl.pallas_call(
        ffn_kernel,
        out_shape=jax.ShapeDtypeStruct((m_pad // PACK, LANES), x.dtype),
        grid_spec=pltpu.PrefetchScalarGridSpec(
            num_scalar_prefetch=0,
            grid=(steps,),
            in_specs=[
                pl.BlockSpec((tp, LANES), lambda i: (i, 0)),            # packed x
                pl.BlockSpec((2, LANES, LANES), lambda i: (0, 0, 0)),   # W_blk, AVG_blk
                pl.BlockSpec((3, LANES), lambda i: (0, 0)),             # b|gamma|beta
            ],
            out_specs=pl.BlockSpec((tp, LANES), lambda i: (i, 0)),
        ),
        compiler_params=pltpu.CompilerParams(
            dimension_semantics=("parallel",)),
    )(xp, mats, vecs)

    return out.reshape(m_pad, dim)[:m].reshape(orig_shape)


def ffn_reference(x, fc1_w, fc1_b, layer_ws, layer_bs, ln_gamma, ln_beta):
    h = x @ fc1_w.T + fc1_b
    for i in range(layer_ws.shape[0]):
        h = h @ layer_ws[i].T + layer_bs[i]
    mean = jnp.mean(h, axis=-1, keepdims=True)
    var = jnp.mean((h - mean) ** 2, axis=-1, keepdims=True)
    return (h - mean) / jnp.sqrt(var + LN_EPS) * ln_gamma + ln_beta


if __name__ == "__main__":
    key = jax.random.PRNGKey(0)
    kx, kw1, kws = jax.random.split(key, 3)

    # Deterministic synthetic parameters (BERT-style init: normal(0, 0.02)
    # weights, zero biases; LayerNorm affine = identity).
    x = jax.random.normal(kx, (BATCH, SEQ, DIM), dtype=jnp.float32)
    fc1_w = 0.02 * jax.random.normal(kw1, (DIM, DIM), dtype=jnp.float32)
    fc1_b = jnp.zeros((DIM,), dtype=jnp.float32)
    layer_ws = 0.02 * jax.random.normal(kws, (NLAYERS, DIM, DIM),
                                        dtype=jnp.float32)
    layer_bs = jnp.zeros((NLAYERS, DIM), dtype=jnp.float32)
    ln_gamma = jnp.ones((DIM,), dtype=jnp.float32)
    ln_beta = jnp.zeros((DIM,), dtype=jnp.float32)

    # One-time parameter fold + lane-dense block expansion (hoisted out of the
    # per-forward path).
    mats, vecs = prepare_params(fc1_w, fc1_b, layer_ws, layer_bs,
                                ln_gamma, ln_beta)

    out = ffn_forward(x, mats, vecs)
    out = jax.block_until_ready(out)

    ref = ffn_reference(x.reshape(-1, DIM), fc1_w, fc1_b, layer_ws, layer_bs,
                        ln_gamma, ln_beta).reshape(BATCH, SEQ, DIM)
    assert out.shape == (BATCH, SEQ, DIM)
    assert jnp.allclose(out, ref, atol=1e-4, rtol=1e-4), "mismatch vs reference"

    print("KERNEL_OK")
</pallas_src>

<mosaic_0001>
module attributes {stable_mosaic.version = 11 : i64} {
  func.func @ffn_kernel(%arg0: i32, %arg1: memref<4x128xf32, #tpu.memory_space<vmem>>, %arg2: memref<2x128x128xf32, #tpu.memory_space<vmem>>, %arg3: memref<3x128xf32, #tpu.memory_space<vmem>>, %arg4: memref<4x128xf32, #tpu.memory_space<vmem>>) attributes {dimension_semantics = [#tpu.dimension_semantics<parallel>], iteration_bounds = array<i64: 1>, scalar_prefetch = 0 : i64, scratch_operands = 0 : i64, tpu.core_type = #tpu.core_type<tc>, window_params = [{transform_indices = @transform_0, window_bounds = array<i64: 4, 128>}, {pipeline_mode = #tpu.pipeline_mode<synchronous>, transform_indices = @transform_1, window_bounds = array<i64: 2, 128, 128>}, {pipeline_mode = #tpu.pipeline_mode<synchronous>, transform_indices = @transform_2, window_bounds = array<i64: 3, 128>}, {transform_indices = @transform_3, window_bounds = array<i64: 4, 128>}]} {
    %c0 = arith.constant 0 : index
    %c0_0 = arith.constant 0 : index
    %0 = vector.load %arg1[%c0, %c0_0] : memref<4x128xf32, #tpu.memory_space<vmem>>, vector<4x128xf32>
    %c0_1 = arith.constant 0 : index
    %c0_2 = arith.constant 0 : index
    %c0_3 = arith.constant 0 : index
    %1 = vector.load %arg2[%c0_1, %c0_2, %c0_3] : memref<2x128x128xf32, #tpu.memory_space<vmem>>, vector<1x128x128xf32>
    %2 = vector.shape_cast %1 : vector<1x128x128xf32> to vector<128x128xf32>
    %c1 = arith.constant 1 : index
    %c0_4 = arith.constant 0 : index
    %c0_5 = arith.constant 0 : index
    %3 = vector.load %arg2[%c1, %c0_4, %c0_5] : memref<2x128x128xf32, #tpu.memory_space<vmem>>, vector<1x128x128xf32>
    %4 = vector.shape_cast %3 : vector<1x128x128xf32> to vector<128x128xf32>
    %c0_6 = arith.constant 0 : index
    %c0_7 = arith.constant 0 : index
    %5 = vector.load %arg3[%c0_6, %c0_7] : memref<3x128xf32, #tpu.memory_space<vmem>>, vector<1x128xf32>
    %c1_8 = arith.constant 1 : index
    %c0_9 = arith.constant 0 : index
    %6 = vector.load %arg3[%c1_8, %c0_9] : memref<3x128xf32, #tpu.memory_space<vmem>>, vector<1x128xf32>
    %c2 = arith.constant 2 : index
    %c0_10 = arith.constant 0 : index
    %7 = vector.load %arg3[%c2, %c0_10] : memref<3x128xf32, #tpu.memory_space<vmem>>, vector<1x128xf32>
    %cst = arith.constant dense<0.000000e+00> : vector<4x128xf32>
    %8 = tpu.matmul %0, %2, %cst {dimension_numbers = #tpu.dot_dimension_numbers<[1], [0], [0], [1], [0, 0, 1, 1], [], []>} : vector<4x128xf32>, vector<128x128xf32>, vector<4x128xf32> -> vector<4x128xf32>
    %9 = vector.broadcast %5 : vector<1x128xf32> to vector<4x128xf32>
    %10 = arith.addf %8, %9 : vector<4x128xf32>
    %cst_11 = arith.constant dense<0.000000e+00> : vector<4x128xf32>
    %11 = tpu.matmul %10, %4, %cst_11 {dimension_numbers = #tpu.dot_dimension_numbers<[1], [0], [0], [1], [0, 0, 1, 1], [], []>} : vector<4x128xf32>, vector<128x128xf32>, vector<4x128xf32> -> vector<4x128xf32>
    %12 = arith.subf %10, %11 : vector<4x128xf32>
    %13 = arith.mulf %12, %12 : vector<4x128xf32>
    %cst_12 = arith.constant dense<0.000000e+00> : vector<4x128xf32>
    %14 = tpu.matmul %13, %4, %cst_12 {dimension_numbers = #tpu.dot_dimension_numbers<[1], [0], [0], [1], [0, 0, 1, 1], [], []>} : vector<4x128xf32>, vector<128x128xf32>, vector<4x128xf32> -> vector<4x128xf32>
    %cst_13 = arith.constant 9.99999974E-6 : f32
    %15 = vector.broadcast %cst_13 : f32 to vector<4x128xf32>
    %16 = arith.addf %14, %15 : vector<4x128xf32>
    %17 = math.rsqrt %16 : vector<4x128xf32>
    %18 = arith.mulf %12, %17 : vector<4x128xf32>
    %19 = vector.broadcast %6 : vector<1x128xf32> to vector<4x128xf32>
    %20 = arith.mulf %18, %19 : vector<4x128xf32>
    %21 = vector.broadcast %7 : vector<1x128xf32> to vector<4x128xf32>
    %22 = arith.addf %20, %21 : vector<4x128xf32>
    %c0_14 = arith.constant 0 : index
    %c0_15 = arith.constant 0 : index
    %23 = vector.load %arg4[%c0_14, %c0_15] : memref<4x128xf32, #tpu.memory_space<vmem>>, vector<4x128xf32>
    tpu.vector_store %arg4[%c0_14, %c0_15], %22 {strides = array<i32>} : memref<4x128xf32, #tpu.memory_space<vmem>>, vector<4x128xf32>,
    return
  }
  func.func @transform_0(%arg0: i32) -> (i32, i32) {
    %c0_i32 = arith.constant 0 : i32
    %c0_i32_0 = arith.constant 0 : i32
    return %arg0, %c0_i32 : i32, i32
  }
  func.func @transform_1(%arg0: i32) -> (i32, i32, i32) {
    %c0_i32 = arith.constant 0 : i32
    %c0_i32_0 = arith.constant 0 : i32
    %c0_i32_1 = arith.constant 0 : i32
    %c0_i32_2 = arith.constant 0 : i32
    return %c0_i32, %c0_i32_0, %c0_i32_1 : i32, i32, i32
  }
  func.func @transform_2(%arg0: i32) -> (i32, i32) {
    %c0_i32 = arith.constant 0 : i32
    %c0_i32_0 = arith.constant 0 : i32
    %c0_i32_1 = arith.constant 0 : i32
    return %c0_i32, %c0_i32_0 : i32, i32
  }
  func.func @transform_3(%arg0: i32) -> (i32, i32) {
    %c0_i32 = arith.constant 0 : i32
    %c0_i32_0 = arith.constant 0 : i32
    return %arg0, %c0_i32 : i32, i32
  }
}

</mosaic_0001>

<llo_original>
// kernel: tpu_custom_call.1
$region0: #{tpu_custom_call.1}
  #allocation0 [shape = 'u32[]', space=smem, size = 0x4, offset = 0x4, fixed_abs, tag = 'smem constant byte address 0x4 - core index']
  #allocation1 [shape = 'u32[144,128]{1,0:T(1,128)}', space=vmem, size = 0x12000, scoped, tag = 'internal scratch']
  %s0 = inlined_call_operand.hbm [shape: f32[4,128], index: 0, kind: input, shape index: {}]
  %s1 = inlined_call_operand.hbm [shape: f32[2,128,128], index: 1, kind: input, shape index: {}]
  %s2 = inlined_call_operand.hbm [shape: f32[3,128], index: 2, kind: input, shape index: {}]
  %s3 = inlined_call_operand.hbm [shape: f32[4,128], index: 3, kind: output, shape index: {}]
  %s4 = sld [smem:[#allocation0]]
  $region34: #{tpu_custom_call.1} parent=0
    _
  %s6 = ssub.s32 1, %s4
  %s7 = scalar_select 0, %s6, %s4
  $region1: #{tpu_custom_call.1} parent=0
    #allocation2 [shape = 'u8[2048]{0}', space=vmem, size = 0x800, scoped, tag = 'input window, operand 0, single buffered']
    #allocation3 [shape = 's32[1]{0}', space=sflag, size = 0x4, scoped, tag = 'scoped memory for tpu_custom_call.1']
    #allocation4 [shape = 's32[1]{0}', space=sflag, size = 0x4, scoped, tag = 'scoped memory for tpu_custom_call.1']
    #allocation5 [shape = 'u8[131072]{0}', space=vmem, size = 0x20000, scoped, tag = 'input window, operand 1, single buffered']
    #allocation6 [shape = 's32[1]{0}', space=sflag, size = 0x4, scoped, tag = 'scoped memory for tpu_custom_call.1']
    #allocation7 [shape = 'u8[2048]{0}', space=vmem, size = 0x800, scoped, tag = 'input window, operand 2, single buffered']
    #allocation8 [shape = 'u8[2048]{0}', space=vmem, size = 0x800, scoped, tag = 'output window, operand 0, single buffered']
    %8 = vsyncpa [#allocation3], 0
    %9 = vsyncpa [#allocation6], 0
    %10 = vsyncpa [#allocation4], 0
    // Predicated region
    $region2: #{tpu_custom_call.1} parent=1 // pred_check
      _
    $region3: #{tpu_custom_call.1} parent=1 // pred_check_branch
      %12 = sbr.rel (0) target = $region5
    $region4: #{tpu_custom_call.1} parent=1 // pred_region
      %s14 = ssub.s32 64, 64
      %15 = vsyncadd [#allocation3], %s14
      %s17 = sshll.u32 [#allocation2], 4
      %s18 = int_to_ptr.vmem [resolvable:$true] %s17
      %20 = dma.hbm_to_vmem [thread:$0]  %s0, 64, %s18, [#allocation3]
    $region5: #{tpu_custom_call.1} parent=1 // pred_fallthru
      _
    // Predicated region
    $region6: #{tpu_custom_call.1} parent=1 // pred_check
      _
    $region7: #{tpu_custom_call.1} parent=1 // pred_check_branch
      %22 = sbr.rel (0) target = $region9
    $region8: #{tpu_custom_call.1} parent=1 // pred_region
      %s24 = ssub.s32 4096, 4096
      %25 = vsyncadd [#allocation6], %s24
      %s26 = sshll.u32 [#allocation5], 4
      %s27 = int_to_ptr.vmem [resolvable:$true] %s26
      %32 = dma.hbm_to_vmem [thread:$0]  %s1, 4096, %s27, [#allocation6], 128, 128, 8
    $region9: #{tpu_custom_call.1} parent=1 // pred_fallthru
      _
    // Predicated region
    $region10: #{tpu_custom_call.1} parent=1 // pred_check
      _
    $region11: #{tpu_custom_call.1} parent=1 // pred_check_branch
      %34 = sbr.rel (0) target = $region13
    $region12: #{tpu_custom_call.1} parent=1 // pred_region
      %s36 = ssub.s32 64, 64
      %37 = vsyncadd [#allocation6], %s36
      %s39 = sshll.u32 [#allocation7], 4
      %s40 = int_to_ptr.vmem [resolvable:$true] %s39
      %42 = dma.hbm_to_vmem [thread:$0]  %s2, 64, %s40, [#allocation6]
    $region13: #{tpu_custom_call.1} parent=1 // pred_fallthru
      _
    // Predicated region
    $region14: #{tpu_custom_call.1} parent=1 // pred_check
      _
    $region15: #{tpu_custom_call.1} parent=1 // pred_check_branch
      %44 = sbr.rel (0) target = $region17
    $region16: #{tpu_custom_call.1} parent=1 // pred_region
      %45 = dma.done [#allocation3], 64
    $region17: #{tpu_custom_call.1} parent=1 // pred_fallthru
      _
    // Predicated region
    $region18: #{tpu_custom_call.1} parent=1 // pred_check
      _
    $region19: #{tpu_custom_call.1} parent=1 // pred_check_branch
      %47 = sbr.rel (0) target = $region21
    $region20: #{tpu_custom_call.1} parent=1 // pred_region
      %48 = dma.done [#allocation6], 4096
    $region21: #{tpu_custom_call.1} parent=1 // pred_fallthru
      _
    // Predicated region
    $region22: #{tpu_custom_call.1} parent=1 // pred_check
      _
    $region23: #{tpu_custom_call.1} parent=1 // pred_check_branch
      %50 = sbr.rel (0) target = $region25
    $region24: #{tpu_custom_call.1} parent=1 // pred_region
      %51 = dma.done [#allocation6], 64
    $region25: #{tpu_custom_call.1} parent=1 // pred_fallthru
      _
    %v52 = vld [vmem:[#allocation2] sm:$0xf]
    %v53 = vld [vmem:[#allocation5] sm:$0xff]
    %v54 = vld [vmem:[#allocation5 + $0x8] sm:$0xff]
    %v55 = vld [vmem:[#allocation5 + $0x10] sm:$0xff]
    %v56 = vld [vmem:[#allocation5 + $0x18] sm:$0xff]
    %v57 = vld [vmem:[#allocation5 + $0x20] sm:$0xff]
    %v58 = vld [vmem:[#allocation5 + $0x28] sm:$0xff]
    %v59 = vld [vmem:[#allocation5 + $0x30] sm:$0xff]
    %v60 = vld [vmem:[#allocation5 + $0x38] sm:$0xff]
    %v61 = vld [vmem:[#allocation5 + $0x40] sm:$0xff]
    %v62 = vld [vmem:[#allocation5 + $0x48] sm:$0xff]
    %v63 = vld [vmem:[#allocation5 + $0x50] sm:$0xff]
    %v64 = vld [vmem:[#allocation5 + $0x58] sm:$0xff]
    %v65 = vld [vmem:[#allocation5 + $0x60] sm:$0xff]
    %v66 = vld [vmem:[#allocation5 + $0x68] sm:$0xff]
    %v67 = vld [vmem:[#allocation5 + $0x70] sm:$0xff]
    %v68 = vld [vmem:[#allocation5 + $0x78] sm:$0xff]
    %s69 = scalar_lea.vmem [#allocation5], 128
    %v70 = vld [vmem:[%s69] sm:$0xff]
    %v71 = vld [vmem:[%s69 + $0x8] sm:$0xff]
    %v72 = vld [vmem:[%s69 + $0x10] sm:$0xff]
    %v73 = vld [vmem:[%s69 + $0x18] sm:$0xff]
    %v74 = vld [vmem:[%s69 + $0x20] sm:$0xff]
    %v75 = vld [vmem:[%s69 + $0x28] sm:$0xff]
    %v76 = vld [vmem:[%s69 + $0x30] sm:$0xff]
    %v77 = vld [vmem:[%s69 + $0x38] sm:$0xff]
    %v78 = vld [vmem:[%s69 + $0x40] sm:$0xff]
    %v79 = vld [vmem:[%s69 + $0x48] sm:$0xff]
    %v80 = vld [vmem:[%s69 + $0x50] sm:$0xff]
    %v81 = vld [vmem:[%s69 + $0x58] sm:$0xff]
    %v82 = vld [vmem:[%s69 + $0x60] sm:$0xff]
    %v83 = vld [vmem:[%s69 + $0x68] sm:$0xff]
    %v84 = vld [vmem:[%s69 + $0x70] sm:$0xff]
    %v85 = vld [vmem:[%s69 + $0x78] sm:$0xff]
    %v86 = vld [vmem:[#allocation7] sm:$0x1]
    %v87 = vld [vmem:[#allocation7 + $0x1] sm:$0x1]
    %v88 = vld [vmem:[#allocation7 + $0x2] sm:$0x1]
    %v89 = vlaneseq
    %v90 = vshrl.u32 %v89, 7
    %v91 = vsub.s32 0, %v90
    %v92 = vrot.slane %v86, %v91
    %93 = vmatprep.subr.mxu0 0.0
    %94 = vmatpush1.msra.mxu0 %v68
    %95 = vmatprep.subr.mxu0 0.0
    %96 = vmatpush1.msra.mxu0 %v67
    %97 = vmatprep.subr.mxu0 0.0
    %98 = vmatpush1.msra.mxu0 %v66
    %99 = vmatprep.subr.mxu0 0.0
    %100 = vmatpush1.msra.mxu0 %v65
    %101 = vmatprep.subr.mxu0 0.0
    %102 = vmatpush1.msra.mxu0 %v64
    %103 = vmatprep.subr.mxu0 0.0
    %104 = vmatpush1.msra.mxu0 %v63
    %105 = vmatprep.subr.mxu0 0.0
    %106 = vmatpush1.msra.mxu0 %v62
    %107 = vmatprep.subr.mxu0 0.0
    %108 = vmatpush1.msra.mxu0 %v61
    %109 = vmatprep.subr.mxu0 0.0
    %110 = vmatpush1.msra.mxu0 %v60
    %111 = vmatprep.subr.mxu0 0.0
    %112 = vmatpush1.msra.mxu0 %v59
    %113 = vmatprep.subr.mxu0 0.0
    %114 = vmatpush1.msra.mxu0 %v58
    %115 = vmatprep.subr.mxu0 0.0
    %116 = vmatpush1.msra.mxu0 %v57
    %117 = vmatprep.subr.mxu0 0.0
    %118 = vmatpush1.msra.mxu0 %v56
    %119 = vmatprep.subr.mxu0 0.0
    %120 = vmatpush1.msra.mxu0 %v55
    %121 = vmatprep.subr.mxu0 0.0
    %122 = vmatpush1.msra.mxu0 %v54
    %123 = vmatprep.subr.mxu0 0.0
    %124 = vmatpush1.msra.mxu0 %v53
    %125 = vmatprep.subr.mxu0 0.0
    %126 = vmatpush2.msra.mxu0 0.0
    %127 = vmatprep.subr.mxu0 0.0
    %128 = vmatpush2.msra.mxu0 0.0
    %129 = vmatprep.subr.mxu0 0.0
    %130 = vmatpush2.msra.mxu0 0.0
    %131 = vmatprep.subr.mxu0 0.0
    %132 = vmatpush2.msra.mxu0 0.0
    %133 = vmatprep.subr.mxu0 0.0
    %134 = vmatpush2.msra.mxu0 0.0
    %135 = vmatprep.subr.mxu0 0.0
    %136 = vmatpush2.msra.mxu0 0.0
    %137 = vmatprep.subr.mxu0 0.0
    %138 = vmatpush2.msra.mxu0 0.0
    %139 = vmatprep.subr.mxu0 0.0
    %140 = vmatpush2.msra.mxu0 0.0
    %141 = vmatprep.subr.mxu0 0.0
    %142 = vmatpush2.msra.mxu0 0.0
    %143 = vmatprep.subr.mxu0 0.0
    %144 = vmatpush2.msra.mxu0 0.0
    %145 = vmatprep.subr.mxu0 0.0
    %146 = vmatpush2.msra.mxu0 0.0
    %147 = vmatprep.subr.mxu0 0.0
    %148 = vmatpush2.msra.mxu0 0.0
    %149 = vmatprep.subr.mxu0 0.0
    %150 = vmatpush2.msra.mxu0 0.0
    %151 = vmatprep.subr.mxu0 0.0
    %152 = vmatpush2.msra.mxu0 0.0
    %153 = vmatprep.subr.mxu0 0.0
    %154 = vmatpush2.msra.mxu0 0.0
    %155 = vmatprep.subr.mxu0 0.0
    %156 = vmatpush2.msra.mxu0 0.0
    %157 = vmatprep.mubr.f32.mxu0 0.0
    %158 = vmatmul.mubr.f32.gmra.mxu0 %v52
    %v159 = vpop.f32.mrf.mxu0
    %v160 = vadd.f32 %v92, %v159
    %v161 = vpop.f32.mrf.mxu0
    %162 = vdwg.mxu0
    %163 = vmatprep.subr.mxu0 0.0
    %164 = vmatpush1.msra.mxu0 %v85
    %165 = vmatprep.subr.mxu0 0.0
    %166 = vmatpush1.msra.mxu0 %v84
    %167 = vmatprep.subr.mxu0 0.0
    %168 = vmatpush1.msra.mxu0 %v83
    %169 = vmatprep.subr.mxu0 0.0
    %170 = vmatpush1.msra.mxu0 %v82
    %171 = vmatprep.subr.mxu0 0.0
    %172 = vmatpush1.msra.mxu0 %v81
    %173 = vmatprep.subr.mxu0 0.0
    %174 = vmatpush1.msra.mxu0 %v80
    %175 = vmatprep.subr.mxu0 0.0
    %176 = vmatpush1.msra.mxu0 %v79
    %177 = vmatprep.subr.mxu0 0.0
    %178 = vmatpush1.msra.mxu0 %v78
    %179 = vmatprep.subr.mxu0 0.0
    %180 = vmatpush1.msra.mxu0 %v77
    %181 = vmatprep.subr.mxu0 0.0
    %182 = vmatpush1.msra.mxu0 %v76
    %183 = vmatprep.subr.mxu0 0.0
    %184 = vmatpush1.msra.mxu0 %v75
    %185 = vmatprep.subr.mxu0 0.0
    %186 = vmatpush1.msra.mxu0 %v74
    %187 = vmatprep.subr.mxu0 0.0
    %188 = vmatpush1.msra.mxu0 %v73
    %189 = vmatprep.subr.mxu0 0.0
    %190 = vmatpush1.msra.mxu0 %v72
    %191 = vmatprep.subr.mxu0 0.0
    %192 = vmatpush1.msra.mxu0 %v71
    %193 = vmatprep.subr.mxu0 0.0
    %194 = vmatpush1.msra.mxu0 %v70
    %195 = vmatprep.subr.mxu0 0.0
    %196 = vmatpush2.msra.mxu0 0.0
    %197 = vmatprep.subr.mxu0 0.0
    %198 = vmatpush2.msra.mxu0 0.0
    %199 = vmatprep.subr.mxu0 0.0
    %200 = vmatpush2.msra.mxu0 0.0
    %201 = vmatprep.subr.mxu0 0.0
    %202 = vmatpush2.msra.mxu0 0.0
    %203 = vmatprep.subr.mxu0 0.0
    %204 = vmatpush2.msra.mxu0 0.0
    %205 = vmatprep.subr.mxu0 0.0
    %206 = vmatpush2.msra.mxu0 0.0
    %207 = vmatprep.subr.mxu0 0.0
    %208 = vmatpush2.msra.mxu0 0.0
    %209 = vmatprep.subr.mxu0 0.0
    %210 = vmatpush2.msra.mxu0 0.0
    %211 = vmatprep.subr.mxu0 0.0
    %212 = vmatpush2.msra.mxu0 0.0
    %213 = vmatprep.subr.mxu0 0.0
    %214 = vmatpush2.msra.mxu0 0.0
    %215 = vmatprep.subr.mxu0 0.0
    %216 = vmatpush2.msra.mxu0 0.0
    %217 = vmatprep.subr.mxu0 0.0
    %218 = vmatpush2.msra.mxu0 0.0
    %219 = vmatprep.subr.mxu0 0.0
    %220 = vmatpush2.msra.mxu0 0.0
    %221 = vmatprep.subr.mxu0 0.0
    %222 = vmatpush2.msra.mxu0 0.0
    %223 = vmatprep.subr.mxu0 0.0
    %224 = vmatpush2.msra.mxu0 0.0
    %225 = vmatprep.subr.mxu0 0.0
    %226 = vmatpush2.msra.mxu0 0.0
    %227 = vmatprep.mubr.f32.mxu0 0.0
    %228 = vmatmul.mubr.f32.gmra.mxu0 %v160
    %v229 = vpop.f32.mrf.mxu0
    %v230 = vadd.f32 0.0, %v229
    %v231 = vpop.f32.mrf.mxu0
    %232 = vdwg.mxu0
    %v233 = vsub.f32 %v160, %v230
    %v234 = vmul.f32 %v233, %v233
    %235 = vmatprep.subr.mxu0 0.0
    %236 = vmatpush1.msra.mxu0 %v85
    %237 = vmatprep.subr.mxu0 0.0
    %238 = vmatpush1.msra.mxu0 %v84
    %239 = vmatprep.subr.mxu0 0.0
    %240 = vmatpush1.msra.mxu0 %v83
    %241 = vmatprep.subr.mxu0 0.0
    %242 = vmatpush1.msra.mxu0 %v82
    %243 = vmatprep.subr.mxu0 0.0
    %244 = vmatpush1.msra.mxu0 %v81
    %245 = vmatprep.subr.mxu0 0.0
    %246 = vmatpush1.msra.mxu0 %v80
    %247 = vmatprep.subr.mxu0 0.0
    %248 = vmatpush1.msra.mxu0 %v79
    %249 = vmatprep.subr.mxu0 0.0
    %250 = vmatpush1.msra.mxu0 %v78
    %251 = vmatprep.subr.mxu0 0.0
    %252 = vmatpush1.msra.mxu0 %v77
    %253 = vmatprep.subr.mxu0 0.0
    %254 = vmatpush1.msra.mxu0 %v76
    %255 = vmatprep.subr.mxu0 0.0
    %256 = vmatpush1.msra.mxu0 %v75
    %257 = vmatprep.subr.mxu0 0.0
    %258 = vmatpush1.msra.mxu0 %v74
    %259 = vmatprep.subr.mxu0 0.0
    %260 = vmatpush1.msra.mxu0 %v73
    %261 = vmatprep.subr.mxu0 0.0
    %262 = vmatpush1.msra.mxu0 %v72
    %263 = vmatprep.subr.mxu0 0.0
    %264 = vmatpush1.msra.mxu0 %v71
    %265 = vmatprep.subr.mxu0 0.0
    %266 = vmatpush1.msra.mxu0 %v70
    %267 = vmatprep.subr.mxu0 0.0
    %268 = vmatpush2.msra.mxu0 0.0
    %269 = vmatprep.subr.mxu0 0.0
    %270 = vmatpush2.msra.mxu0 0.0
    %271 = vmatprep.subr.mxu0 0.0
    %272 = vmatpush2.msra.mxu0 0.0
    %273 = vmatprep.subr.mxu0 0.0
    %274 = vmatpush2.msra.mxu0 0.0
    %275 = vmatprep.subr.mxu0 0.0
    %276 = vmatpush2.msra.mxu0 0.0
    %277 = vmatprep.subr.mxu0 0.0
    %278 = vmatpush2.msra.mxu0 0.0
    %279 = vmatprep.subr.mxu0 0.0
    %280 = vmatpush2.msra.mxu0 0.0
    %281 = vmatprep.subr.mxu0 0.0
    %282 = vmatpush2.msra.mxu0 0.0
    %283 = vmatprep.subr.mxu0 0.0
    %284 = vmatpush2.msra.mxu0 0.0
    %285 = vmatprep.subr.mxu0 0.0
    %286 = vmatpush2.msra.mxu0 0.0
    %287 = vmatprep.subr.mxu0 0.0
    %288 = vmatpush2.msra.mxu0 0.0
    %289 = vmatprep.subr.mxu0 0.0
    %290 = vmatpush2.msra.mxu0 0.0
    %291 = vmatprep.subr.mxu0 0.0
    %292 = vmatpush2.msra.mxu0 0.0
    %293 = vmatprep.subr.mxu0 0.0
    %294 = vmatpush2.msra.mxu0 0.0
    %295 = vmatprep.subr.mxu0 0.0
    %296 = vmatpush2.msra.mxu0 0.0
    %297 = vmatprep.subr.mxu0 0.0
    %298 = vmatpush2.msra.mxu0 0.0
    %299 = vmatprep.mubr.f32.mxu0 0.0
    %300 = vmatmul.mubr.f32.gmra.mxu0 %v234
    %v301 = vpop.f32.mrf.mxu0
    %v302 = vadd.f32 1e-05, %v301
    %v303 = vpop.f32.mrf.mxu0
    %304 = vdwg.mxu0
    %v305 = vrsqrt.pop %v302
    %v306 = vmul.f32 %v233, %v305
    %v307 = vlaneseq
    %v308 = vshrl.u32 %v307, 7
    %v309 = vsub.s32 0, %v308
    %v310 = vrot.slane %v87, %v309
    %v311 = vmul.f32 %v306, %v310
    %v312 = vlaneseq
    %v313 = vshrl.u32 %v312, 7
    %v314 = vsub.s32 0, %v313
    %v315 = vrot.slane %v88, %v314
    %v316 = vadd.f32 %v311, %v315
    %317 = vst [vmem:[#allocation8] sm:$0xf] %v316
    // Predicated region
    $region26: #{tpu_custom_call.1} parent=1 // pred_check
      _
    $region27: #{tpu_custom_call.1} parent=1 // pred_check_branch
      %319 = sbr.rel (0) target = $region29
    $region28: #{tpu_custom_call.1} parent=1 // pred_region
      %s321 = ssub.s32 64, 64
      %322 = vsyncadd [#allocation4], %s321
      %s324 = sshll.u32 [#allocation8], 4
      %s325 = int_to_ptr.vmem [resolvable:$true] %s324
      %327 = dma.vmem_to_hbm [thread:$0]  %s325, 64, %s3, [#allocation4]
    $region29: #{tpu_custom_call.1} parent=1 // pred_fallthru
      _
    // Predicated region
    $region30: #{tpu_custom_call.1} parent=1 // pred_check
      _
    $region31: #{tpu_custom_call.1} parent=1 // pred_check_branch
      %329 = sbr.rel (0) target = $region33
    $region32: #{tpu_custom_call.1} parent=1 // pred_region
      %330 = dma.done [#allocation4], 64
    $region33: #{tpu_custom_call.1} parent=1 // pred_fallthru
      _
    %331 = vsyncpa [#allocation3], 1
    %332 = vsyncpa [#allocation6], 1
    %333 = vsyncpa [#allocation4], 1

</llo_original>
